<compile_context>
chip_gen: v6e
topology: v6e:2x2x1
jax: 0.10.0
libtpu: 0.0.40
codegen_flags: <defaults>
</compile_context>

<pallas_src>
import jax
import jax.numpy as jnp
from jax.experimental import pallas as pl
from jax.experimental.pallas import tpu as pltpu


def _round_up(n, m):
    return ((n + m - 1) // m) * m


def _pad_to(a, shape):
    pads = [(0, t - s) for s, t in zip(a.shape, shape)]
    return jnp.pad(a, pads)


def _head_kernel(x_ref, w1_ref, b1_ref, w2_ref, b2_ref, w3_ref, b3_ref,
                 x1_ref, x2_ref, x3_ref):
    # Dropout (p=0.3) is identity in eval/inference mode.
    x = x_ref[...]                                  # bf16 [TB, Hp]

    # dense1 (bf16 MXU, f32 accum) + bias + tanh in f32
    h1 = jnp.dot(x, w1_ref[...], preferred_element_type=jnp.float32) + b1_ref[...]
    x1 = jnp.tanh(h1)                               # f32 [TB, D1p]
    x1_ref[...] = x1.astype(x1_ref.dtype)

    # dense2 + tanh
    x1b = x1.astype(jnp.bfloat16)
    h2 = jnp.dot(x1b, w2_ref[...], preferred_element_type=jnp.float32) + b2_ref[...]
    x2 = jnp.tanh(h2)                               # f32 [TB, D2p]
    x2_ref[...] = x2.astype(x2_ref.dtype)

    # out_proj (no activation)
    x2b = x2.astype(jnp.bfloat16)
    x3 = jnp.dot(x2b, w3_ref[...], preferred_element_type=jnp.float32) + b3_ref[...]
    x3_ref[...] = x3.astype(x3_ref.dtype)


def wav2vec2_classification_head(features, w1, b1, w2, b2, w3, b3, *, tb_max=512):
    """features: [B, hidden] f32.  Returns (x1 [B,300], x2 [B,100], x3 [B,num_labels]).

    tb_max: max batch-tile rows per grid step (kept modest so double-buffered
    tiles fit the default scoped VMEM on v5e/v6e/v7x without raising
    vmem_limit_bytes; bump it for very large batches on 128 MiB-VMEM chips).
    """
    B, H = features.shape
    D1, D2, L = w1.shape[1], w2.shape[1], w3.shape[1]

    # Lane-pad the contraction dim and all output feature dims to multiples of
    # 128 (unmasked loads/stores + full MXU tiles for the chained matmuls).
    Hp = _round_up(H, 128)
    D1p = _round_up(D1, 128)
    D2p = _round_up(D2, 128)
    Lp = _round_up(L, 128)

    # Batch tile: multiple of 8 (sublanes); pad B so the grid divides evenly.
    TB = min(_round_up(B, 8), _round_up(tb_max, 8))
    Bp = _round_up(B, TB)

    # bf16 MXU inputs (f32 accumulation inside the kernel); biases stay f32.
    # Zero padding is load-bearing: padded cols of h1/h2 become tanh(0)=0 and
    # the matching padded rows of the next weight are zero.
    xp = _pad_to(features, (Bp, Hp)).astype(jnp.bfloat16)
    w1p = _pad_to(w1, (Hp, D1p)).astype(jnp.bfloat16)
    w2p = _pad_to(w2, (D1p, D2p)).astype(jnp.bfloat16)
    w3p = _pad_to(w3, (D2p, Lp)).astype(jnp.bfloat16)
    b1p = _pad_to(b1, (1, D1p)).astype(jnp.float32)
    b2p = _pad_to(b2, (1, D2p)).astype(jnp.float32)
    b3p = _pad_to(b3, (1, Lp)).astype(jnp.float32)

    grid = (Bp // TB,)

    flops = 2 * Bp * (Hp * D1p + D1p * D2p + D2p * Lp)
    transcendentals = Bp * (D1p + D2p)
    bytes_accessed = (
        xp.size * 2 + (w1p.size + w2p.size + w3p.size) * 2
        + (b1p.size + b2p.size + b3p.size) * 4
        + Bp * (D1p + D2p + Lp) * 4)

    def row_spec(d):
        return pl.BlockSpec((TB, d), lambda i: (i, 0))

    def const_spec(shape):
        return pl.BlockSpec(shape, lambda i: (0, 0))

    x1p, x2p, x3p = pl.pallas_call(
        _head_kernel,
        grid=grid,
        out_shape=(
            jax.ShapeDtypeStruct((Bp, D1p), jnp.float32),
            jax.ShapeDtypeStruct((Bp, D2p), jnp.float32),
            jax.ShapeDtypeStruct((Bp, Lp), jnp.float32),
        ),
        in_specs=[
            row_spec(Hp),                                # features tile (pipelined)
            const_spec((Hp, D1p)), const_spec((1, D1p)),   # dense1 (VMEM-resident)
            const_spec((D1p, D2p)), const_spec((1, D2p)),  # dense2
            const_spec((D2p, Lp)), const_spec((1, Lp)),    # out_proj
        ],
        out_specs=(row_spec(D1p), row_spec(D2p), row_spec(Lp)),
        compiler_params=pltpu.CompilerParams(
            dimension_semantics=("parallel",)),          # shards across v7x's 2 TCs
        cost_estimate=pl.CostEstimate(
            flops=flops, transcendentals=transcendentals,
            bytes_accessed=bytes_accessed),
    )(xp, w1p, b1p, w2p, b2p, w3p, b3p)

    # Slice off padding (rows from batch padding, cols from lane padding).
    return x1p[:B, :D1], x2p[:B, :D2], x3p[:B, :L]


def init_linear_params(key, fan_in, fan_out):
    """Deterministic torch.nn.Linear-style init: U(-1/sqrt(fan_in), 1/sqrt(fan_in)).
    Weight returned as [fan_in, fan_out] (transposed vs torch's [out, in])."""
    kw, kb = jax.random.split(key)
    bound = 1.0 / jnp.sqrt(jnp.float32(fan_in))
    w = jax.random.uniform(kw, (fan_in, fan_out), jnp.float32, -bound, bound)
    b = jax.random.uniform(kb, (1, fan_out), jnp.float32, -bound, bound)
    return w, b


if __name__ == "__main__":
    hidden_size = 32
    num_labels = 4
    batch = 16

    key = jax.random.PRNGKey(0)
    k_feat, k1, k2, k3 = jax.random.split(key, 4)

    features = jax.random.normal(k_feat, (batch, hidden_size), jnp.float32)
    w1, b1 = init_linear_params(k1, hidden_size, 300)
    w2, b2 = init_linear_params(k2, 300, 100)
    w3, b3 = init_linear_params(k3, 100, num_labels)

    # tb_max=8 -> two grid steps at this demo batch, exercising the tiled pipeline.
    x1, x2, x3 = wav2vec2_classification_head(
        features, w1, b1, w2, b2, w3, b3, tb_max=8)
    jax.block_until_ready((x1, x2, x3))

    assert x1.shape == (batch, 300)
    assert x2.shape == (batch, 100)
    assert x3.shape == (batch, num_labels)

    # Reference with matching precision (bf16 matmul inputs, f32 accumulation).
    bf, f32 = jnp.bfloat16, jnp.float32
    r1 = jnp.tanh(jnp.dot(features.astype(bf), w1.astype(bf),
                          preferred_element_type=f32) + b1)
    r2 = jnp.tanh(jnp.dot(r1.astype(bf), w2.astype(bf),
                          preferred_element_type=f32) + b2)
    r3 = jnp.dot(r2.astype(bf), w3.astype(bf), preferred_element_type=f32) + b3
    assert jnp.allclose(x1, r1, atol=1e-4)
    assert jnp.allclose(x2, r2, atol=1e-4)
    assert jnp.allclose(x3, r3, atol=1e-4)

    # Loose sanity check vs pure-f32 math (only bf16 rounding error allowed).
    f1 = jnp.tanh(features @ w1 + b1)
    f2 = jnp.tanh(f1 @ w2 + b2)
    f3 = f2 @ w3 + b3
    assert jnp.allclose(x1, f1, atol=5e-2)
    assert jnp.allclose(x2, f2, atol=5e-2)
    assert jnp.allclose(x3, f3, atol=5e-2)

    print("KERNEL_OK")
</pallas_src>

<mosaic_0001>
module attributes {stable_mosaic.version = 11 : i64} {
  func.func @_head_kernel(%arg0: i32, %arg1: memref<8x128xbf16, #tpu.memory_space<vmem>>, %arg2: memref<128x384xbf16, #tpu.memory_space<vmem>>, %arg3: memref<1x384xf32, #tpu.memory_space<vmem>>, %arg4: memref<384x128xbf16, #tpu.memory_space<vmem>>, %arg5: memref<1x128xf32, #tpu.memory_space<vmem>>, %arg6: memref<128x128xbf16, #tpu.memory_space<vmem>>, %arg7: memref<1x128xf32, #tpu.memory_space<vmem>>, %arg8: memref<8x384xf32, #tpu.memory_space<vmem>>, %arg9: memref<8x128xf32, #tpu.memory_space<vmem>>, %arg10: memref<8x128xf32, #tpu.memory_space<vmem>>) attributes {dimension_semantics = [#tpu.dimension_semantics<parallel>], iteration_bounds = array<i64: 2>, scalar_prefetch = 0 : i64, scratch_operands = 0 : i64, tpu.core_type = #tpu.core_type<tc>, window_params = [{transform_indices = @transform_0, window_bounds = array<i64: 8, 128>}, {pipeline_mode = #tpu.pipeline_mode<synchronous>, transform_indices = @transform_1, window_bounds = array<i64: 128, 384>}, {pipeline_mode = #tpu.pipeline_mode<synchronous>, transform_indices = @transform_2, window_bounds = array<i64: 1, 384>}, {pipeline_mode = #tpu.pipeline_mode<synchronous>, transform_indices = @transform_3, window_bounds = array<i64: 384, 128>}, {pipeline_mode = #tpu.pipeline_mode<synchronous>, transform_indices = @transform_4, window_bounds = array<i64: 1, 128>}, {pipeline_mode = #tpu.pipeline_mode<synchronous>, transform_indices = @transform_5, window_bounds = array<i64: 128, 128>}, {pipeline_mode = #tpu.pipeline_mode<synchronous>, transform_indices = @transform_6, window_bounds = array<i64: 1, 128>}, {transform_indices = @transform_7, window_bounds = array<i64: 8, 384>}, {transform_indices = @transform_8, window_bounds = array<i64: 8, 128>}, {transform_indices = @transform_9, window_bounds = array<i64: 8, 128>}]} {
    %c0 = arith.constant 0 : index
    %c0_0 = arith.constant 0 : index
    %0 = vector.load %arg1[%c0, %c0_0] : memref<8x128xbf16, #tpu.memory_space<vmem>>, vector<8x128xbf16>
    %c0_1 = arith.constant 0 : index
    %c0_2 = arith.constant 0 : index
    %1 = vector.load %arg2[%c0_1, %c0_2] : memref<128x384xbf16, #tpu.memory_space<vmem>>, vector<128x384xbf16>
    %cst = arith.constant dense<0.000000e+00> : vector<8x384xf32>
    %2 = tpu.matmul %0, %1, %cst {dimension_numbers = #tpu.dot_dimension_numbers<[1], [0], [0], [1], [0, 0, 1, 1], [], []>} : vector<8x128xbf16>, vector<128x384xbf16>, vector<8x384xf32> -> vector<8x384xf32>
    %c0_3 = arith.constant 0 : index
    %c0_4 = arith.constant 0 : index
    %3 = vector.load %arg3[%c0_3, %c0_4] : memref<1x384xf32, #tpu.memory_space<vmem>>, vector<1x384xf32>
    %4 = vector.broadcast %3 : vector<1x384xf32> to vector<8x384xf32>
    %5 = arith.addf %2, %4 : vector<8x384xf32>
    %6 = math.tanh %5 : vector<8x384xf32>
    %c0_5 = arith.constant 0 : index
    %c0_6 = arith.constant 0 : index
    %7 = vector.load %arg8[%c0_5, %c0_6] : memref<8x384xf32, #tpu.memory_space<vmem>>, vector<8x384xf32>
    tpu.vector_store %arg8[%c0_5, %c0_6], %6 {strides = array<i32>} : memref<8x384xf32, #tpu.memory_space<vmem>>, vector<8x384xf32>,
    %8 = arith.truncf %6 : vector<8x384xf32> to vector<8x384xbf16>
    %c0_7 = arith.constant 0 : index
    %c0_8 = arith.constant 0 : index
    %9 = vector.load %arg4[%c0_7, %c0_8] : memref<384x128xbf16, #tpu.memory_space<vmem>>, vector<384x128xbf16>
    %cst_9 = arith.constant dense<0.000000e+00> : vector<8x128xf32>
    %10 = tpu.matmul %8, %9, %cst_9 {dimension_numbers = #tpu.dot_dimension_numbers<[1], [0], [0], [1], [0, 0, 1, 1], [], []>} : vector<8x384xbf16>, vector<384x128xbf16>, vector<8x128xf32> -> vector<8x128xf32>
    %c0_10 = arith.constant 0 : index
    %c0_11 = arith.constant 0 : index
    %11 = vector.load %arg5[%c0_10, %c0_11] : memref<1x128xf32, #tpu.memory_space<vmem>>, vector<1x128xf32>
    %12 = vector.broadcast %11 : vector<1x128xf32> to vector<8x128xf32>
    %13 = arith.addf %10, %12 : vector<8x128xf32>
    %14 = math.tanh %13 : vector<8x128xf32>
    %c0_12 = arith.constant 0 : index
    %c0_13 = arith.constant 0 : index
    %15 = vector.load %arg9[%c0_12, %c0_13] : memref<8x128xf32, #tpu.memory_space<vmem>>, vector<8x128xf32>
    tpu.vector_store %arg9[%c0_12, %c0_13], %14 {strides = array<i32>} : memref<8x128xf32, #tpu.memory_space<vmem>>, vector<8x128xf32>,
    %16 = arith.truncf %14 : vector<8x128xf32> to vector<8x128xbf16>
    %c0_14 = arith.constant 0 : index
    %c0_15 = arith.constant 0 : index
    %17 = vector.load %arg6[%c0_14, %c0_15] : memref<128x128xbf16, #tpu.memory_space<vmem>>, vector<128x128xbf16>
    %cst_16 = arith.constant dense<0.000000e+00> : vector<8x128xf32>
    %18 = tpu.matmul %16, %17, %cst_16 {dimension_numbers = #tpu.dot_dimension_numbers<[1], [0], [0], [1], [0, 0, 1, 1], [], []>} : vector<8x128xbf16>, vector<128x128xbf16>, vector<8x128xf32> -> vector<8x128xf32>
    %c0_17 = arith.constant 0 : index
    %c0_18 = arith.constant 0 : index
    %19 = vector.load %arg7[%c0_17, %c0_18] : memref<1x128xf32, #tpu.memory_space<vmem>>, vector<1x128xf32>
    %20 = vector.broadcast %19 : vector<1x128xf32> to vector<8x128xf32>
    %21 = arith.addf %18, %20 : vector<8x128xf32>
    %c0_19 = arith.constant 0 : index
    %c0_20 = arith.constant 0 : index
    %22 = vector.load %arg10[%c0_19, %c0_20] : memref<8x128xf32, #tpu.memory_space<vmem>>, vector<8x128xf32>
    tpu.vector_store %arg10[%c0_19, %c0_20], %21 {strides = array<i32>} : memref<8x128xf32, #tpu.memory_space<vmem>>, vector<8x128xf32>,
    return
  }
  func.func @transform_0(%arg0: i32) -> (i32, i32) {
    %c0_i32 = arith.constant 0 : i32
    %c0_i32_0 = arith.constant 0 : i32
    return %arg0, %c0_i32 : i32, i32
  }
  func.func @transform_1(%arg0: i32) -> (i32, i32) {
    %c0_i32 = arith.constant 0 : i32
    %c0_i32_0 = arith.constant 0 : i32
    %c0_i32_1 = arith.constant 0 : i32
    return %c0_i32, %c0_i32_0 : i32, i32
  }
  func.func @transform_2(%arg0: i32) -> (i32, i32) {
    %c0_i32 = arith.constant 0 : i32
    %c0_i32_0 = arith.constant 0 : i32
    %c0_i32_1 = arith.constant 0 : i32
    return %c0_i32, %c0_i32_0 : i32, i32
  }
  func.func @transform_3(%arg0: i32) -> (i32, i32) {
    %c0_i32 = arith.constant 0 : i32
    %c0_i32_0 = arith.constant 0 : i32
    %c0_i32_1 = arith.constant 0 : i32
    return %c0_i32, %c0_i32_0 : i32, i32
  }
  func.func @transform_4(%arg0: i32) -> (i32, i32) {
    %c0_i32 = arith.constant 0 : i32
    %c0_i32_0 = arith.constant 0 : i32
    %c0_i32_1 = arith.constant 0 : i32
    return %c0_i32, %c0_i32_0 : i32, i32
  }
  func.func @transform_5(%arg0: i32) -> (i32, i32) {
    %c0_i32 = arith.constant 0 : i32
    %c0_i32_0 = arith.constant 0 : i32
    %c0_i32_1 = arith.constant 0 : i32
    return %c0_i32, %c0_i32_0 : i32, i32
  }
  func.func @transform_6(%arg0: i32) -> (i32, i32) {
    %c0_i32 = arith.constant 0 : i32
    %c0_i32_0 = arith.constant 0 : i32
    %c0_i32_1 = arith.constant 0 : i32
    return %c0_i32, %c0_i32_0 : i32, i32
  }
  func.func @transform_7(%arg0: i32) -> (i32, i32) {
    %c0_i32 = arith.constant 0 : i32
    %c0_i32_0 = arith.constant 0 : i32
    return %arg0, %c0_i32 : i32, i32
  }
  func.func @transform_8(%arg0: i32) -> (i32, i32) {
    %c0_i32 = arith.constant 0 : i32
    %c0_i32_0 = arith.constant 0 : i32
    return %arg0, %c0_i32 : i32, i32
  }
  func.func @transform_9(%arg0: i32) -> (i32, i32) {
    %c0_i32 = arith.constant 0 : i32
    %c0_i32_0 = arith.constant 0 : i32
    return %arg0, %c0_i32 : i32, i32
  }
}

</mosaic_0001>

<llo_original>
// kernel: tpu_custom_call.1
$region0: #{tpu_custom_call.1}
  #allocation0 [shape = 'u32[]', space=smem, size = 0x4, offset = 0x4, fixed_abs, tag = 'smem constant byte address 0x4 - core index']
  #allocation1 [shape = 'u32[144,128]{1,0:T(1,128)}', space=vmem, size = 0x12000, scoped, tag = 'internal scratch']
  %s0 = inlined_call_operand.hbm [shape: bf16[16,128], index: 0, kind: input, shape index: {}]
  %s1 = inlined_call_operand.hbm [shape: bf16[128,384], index: 1, kind: input, shape index: {}]
  %s2 = inlined_call_operand.vmem [shape: f32[1,384], index: 2, kind: input, shape index: {}]
  %s3 = inlined_call_operand.hbm [shape: bf16[384,128], index: 3, kind: input, shape index: {}]
  %s4 = inlined_call_operand.vmem [shape: f32[1,128], index: 4, kind: input, shape index: {}]
  %s5 = inlined_call_operand.hbm [shape: bf16[128,128], index: 5, kind: input, shape index: {}]
  %s6 = inlined_call_operand.vmem [shape: f32[1,128], index: 6, kind: input, shape index: {}]
  %s7 = inlined_call_operand.hbm [shape: f32[16,384], index: 7, kind: output, shape index: {0}]
  %s8 = inlined_call_operand.hbm [shape: f32[16,128], index: 8, kind: output, shape index: {1}]
  %s9 = inlined_call_operand.hbm [shape: f32[16,128], index: 9, kind: output, shape index: {2}]
  %10 = xla_tuple %s7, %s8, %s9
  %s11 = sld [smem:[#allocation0]]
  $region93: #{tpu_custom_call.1} parent=0
    _
  %s13 = ssub.s32 1, %s11
  %s14 = scalar_select 0, %s13, %s11
  $region1: #{tpu_custom_call.1} parent=0
    #allocation2 [shape = 'u8[4096]{0}', space=vmem, size = 0x1000, scoped, tag = 'input window, operand 0']
    #allocation3 [shape = 's32[2]{0}', space=sflag, size = 0x8, scoped, tag = 'scoped memory for tpu_custom_call.1']
    #allocation4 [shape = 's32[2]{0}', space=sflag, size = 0x8, scoped, tag = 'scoped memory for tpu_custom_call.1']
    #allocation5 [shape = 'u8[98304]{0}', space=vmem, size = 0x18000, scoped, tag = 'input window, operand 1, single buffered']
    #allocation6 [shape = 's32[1]{0}', space=sflag, size = 0x4, scoped, tag = 'scoped memory for tpu_custom_call.1']
    #allocation7 [shape = 'u8[98304]{0}', space=vmem, size = 0x18000, scoped, tag = 'input window, operand 3, single buffered']
    #allocation8 [shape = 'u8[32768]{0}', space=vmem, size = 0x8000, scoped, tag = 'input window, operand 5, single buffered']
    #allocation9 [shape = 's32[1]{0}', space=sflag, size = 0x4, scoped, tag = 'scoped memory for tpu_custom_call.1']
    #allocation10 [shape = 'u8[24576]{0}', space=vmem, size = 0x6000, scoped, tag = 'output window, operand 0']
    #allocation11 [shape = 'u8[8192]{0}', space=vmem, size = 0x2000, scoped, tag = 'output window, operand 1']
    #allocation12 [shape = 's32[2]{0}', space=sflag, size = 0x8, scoped, tag = 'scoped memory for tpu_custom_call.1']
    #allocation13 [shape = 'u8[8192]{0}', space=vmem, size = 0x2000, scoped, tag = 'output window, operand 2']
    %15 = vsyncpa [#allocation3], 0
    %s16 = scalar_lea.sflag [#allocation3], 1
    %17 = vsyncpa %s16, 0
    %18 = vsyncpa [#allocation6], 0
    %19 = vsyncpa [#allocation9], 0
    %20 = vsyncpa [#allocation4], 0
    %s21 = scalar_lea.sflag [#allocation4], 1
    %22 = vsyncpa %s21, 0
    %23 = vsyncpa [#allocation12], 0
    %s24 = scalar_lea.sflag [#allocation12], 1
    %25 = vsyncpa %s24, 0
    loop: start=0, step=1, limit=4
    $region2: #{tpu_custom_call.1} parent=1 // loop_pre_header
      _
    $region3: #{tpu_custom_call.1} parent=1 // loop_header
      %s27 = sphi 0, %s31
      %p28 = scmp.ge.s32.totalorder %s27, 4
      %s37 = sphi 0, %s39
      %s40 = sphi 0, %s37
      %s41 = sphi 0, %s40
      %s57 = sphi 0, %s41
      %s61 = sphi 0, %s61
      %s63 = sphi 0, %s61
      %s64 = sphi 0, %s63
      %s78 = sphi 0, %s64
      %s82 = sphi 0, %s82
      %s84 = sphi 0, %s82
      %s85 = sphi 0, %s84
      %s99 = sphi 0, %s85
      %s103 = sphi 0, %s103
      %s105 = sphi 0, %s103
      %s106 = sphi 0, %s105
      %s120 = sphi 0, %s106
      %s124 = sphi 0, %s124
      %s126 = sphi 0, %s124
      %s127 = sphi 0, %s126
      %s141 = sphi 0, %s127
      %s145 = sphi 0, %s145
      %s147 = sphi 0, %s145
      %s148 = sphi 0, %s147
      %s162 = sphi 0, %s148
      %s166 = sphi 0, %s166
      %s168 = sphi 0, %s166
      %s169 = sphi 0, %s168
      %s183 = sphi 0, %s169
      %s189 = sphi 0, %s191
      %s192 = sphi 0, %s189
      %s193 = sphi 0, %s192
      %s209 = sphi 0, %s193
      %s215 = sphi 0, %s217
      %s218 = sphi 0, %s215
      %s219 = sphi 0, %s218
      %s235 = sphi 0, %s219
      %s241 = sphi 0, %s243
      %s244 = sphi 0, %s241
      %s245 = sphi 0, %s244
      %s261 = sphi 0, %s245
    $region4: #{tpu_custom_call.1} parent=1 // loop_header_branch
      %30 = sbr.rel (%p28) target = $region8
    $region5: #{tpu_custom_call.1} parent=1 // loop_body
      %s32 = ssub.s32 %s27, 1
      %s33 = ssub.s32 %s27, 2
      %s34 = sadd.s32 %s27, 1
      %s35 = ssub.s32 %s27, %s34
      %p36 = scmp.eq.s32.totalorder %s35, 0
      %s38 = sadd.s32 %s37, 1
      %s39 = scalar_select %p36, %s37, %s38
      %p42 = pneg %p36
      %p43 = scmp.eq.s32.totalorder %s27, 1
      %p44 = por %p42, %p43
      %p45 = scmp.ne.s32.totalorder %s37, %s40
      %p46 = scmp.eq.s32.totalorder %s27, 0
      %p47 = por %p45, %p46
      %p48 = scmp.ne.s32.totalorder %s37, %s40
      %p49 = scmp.eq.s32.totalorder %s32, 1
      %p50 = por %p48, %p49
      %p51 = scmp.ne.s32.totalorder %s40, %s41
      %p52 = scmp.eq.s32.totalorder %s32, 0
      %p53 = por %p51, %p52
      %p54 = scmp.ne.s32.totalorder %s40, %s41
      %p55 = scmp.eq.s32.totalorder %s33, 1
      %p56 = por %p54, %p55
      %p58 = scmp.ne.s32.totalorder %s41, %s57
      %p59 = scmp.eq.s32.totalorder %s33, 0
      %p60 = por %p58, %p59
      %s62 = sadd.s32 %s61, 1
      %p65 = scmp.eq.s32.totalorder %s27, 1
      %p66 = scmp.ne.s32.totalorder %s61, %s63
      %p67 = scmp.eq.s32.totalorder %s27, 0
      %p68 = por %p66, %p67
      %p69 = scmp.ne.s32.totalorder %s61, %s63
      %p70 = scmp.eq.s32.totalorder %s32, 1
      %p71 = por %p69, %p70
      %p72 = scmp.ne.s32.totalorder %s63, %s64
      %p73 = scmp.eq.s32.totalorder %s32, 0
      %p74 = por %p72, %p73
      %p75 = scmp.ne.s32.totalorder %s63, %s64
      %p76 = scmp.eq.s32.totalorder %s33, 1
      %p77 = por %p75, %p76
      %p79 = scmp.ne.s32.totalorder %s64, %s78
      %p80 = scmp.eq.s32.totalorder %s33, 0
      %p81 = por %p79, %p80
      %s83 = sadd.s32 %s82, 1
      %p86 = scmp.eq.s32.totalorder %s27, 1
      %p87 = scmp.ne.s32.totalorder %s82, %s84
      %p88 = scmp.eq.s32.totalorder %s27, 0
      %p89 = por %p87, %p88
      %p90 = scmp.ne.s32.totalorder %s82, %s84
      %p91 = scmp.eq.s32.totalorder %s32, 1
      %p92 = por %p90, %p91
      %p93 = scmp.ne.s32.totalorder %s84, %s85
      %p94 = scmp.eq.s32.totalorder %s32, 0
      %p95 = por %p93, %p94
      %p96 = scmp.ne.s32.totalorder %s84, %s85
      %p97 = scmp.eq.s32.totalorder %s33, 1
      %p98 = por %p96, %p97
      %p100 = scmp.ne.s32.totalorder %s85, %s99
      %p101 = scmp.eq.s32.totalorder %s33, 0
      %p102 = por %p100, %p101
      %s104 = sadd.s32 %s103, 1
      %p107 = scmp.eq.s32.totalorder %s27, 1
      %p108 = scmp.ne.s32.totalorder %s103, %s105
      %p109 = scmp.eq.s32.totalorder %s27, 0
      %p110 = por %p108, %p109
      %p111 = scmp.ne.s32.totalorder %s103, %s105
      %p112 = scmp.eq.s32.totalorder %s32, 1
      %p113 = por %p111, %p112
      %p114 = scmp.ne.s32.totalorder %s105, %s106
      %p115 = scmp.eq.s32.totalorder %s32, 0
      %p116 = por %p114, %p115
      %p117 = scmp.ne.s32.totalorder %s105, %s106
      %p118 = scmp.eq.s32.totalorder %s33, 1
      %p119 = por %p117, %p118
      %p121 = scmp.ne.s32.totalorder %s106, %s120
      %p122 = scmp.eq.s32.totalorder %s33, 0
      %p123 = por %p121, %p122
      %s125 = sadd.s32 %s124, 1
      %p128 = scmp.eq.s32.totalorder %s27, 1
      %p129 = scmp.ne.s32.totalorder %s124, %s126
      %p130 = scmp.eq.s32.totalorder %s27, 0
      %p131 = por %p129, %p130
      %p132 = scmp.ne.s32.totalorder %s124, %s126
      %p133 = scmp.eq.s32.totalorder %s32, 1
      %p134 = por %p132, %p133
      %p135 = scmp.ne.s32.totalorder %s126, %s127
      %p136 = scmp.eq.s32.totalorder %s32, 0
      %p137 = por %p135, %p136
      %p138 = scmp.ne.s32.totalorder %s126, %s127
      %p139 = scmp.eq.s32.totalorder %s33, 1
      %p140 = por %p138, %p139
      %p142 = scmp.ne.s32.totalorder %s127, %s141
      %p143 = scmp.eq.s32.totalorder %s33, 0
      %p144 = por %p142, %p143
      %s146 = sadd.s32 %s145, 1
      %p149 = scmp.eq.s32.totalorder %s27, 1
      %p150 = scmp.ne.s32.totalorder %s145, %s147
      %p151 = scmp.eq.s32.totalorder %s27, 0
      %p152 = por %p150, %p151
      %p153 = scmp.ne.s32.totalorder %s145, %s147
      %p154 = scmp.eq.s32.totalorder %s32, 1
      %p155 = por %p153, %p154
      %p156 = scmp.ne.s32.totalorder %s147, %s148
      %p157 = scmp.eq.s32.totalorder %s32, 0
      %p158 = por %p156, %p157
      %p159 = scmp.ne.s32.totalorder %s147, %s148
      %p160 = scmp.eq.s32.totalorder %s33, 1
      %p161 = por %p159, %p160
      %p163 = scmp.ne.s32.totalorder %s148, %s162
      %p164 = scmp.eq.s32.totalorder %s33, 0
      %p165 = por %p163, %p164
      %s167 = sadd.s32 %s166, 1
      %p170 = scmp.eq.s32.totalorder %s27, 1
      %p171 = scmp.ne.s32.totalorder %s166, %s168
      %p172 = scmp.eq.s32.totalorder %s27, 0
      %p173 = por %p171, %p172
      %p174 = scmp.ne.s32.totalorder %s166, %s168
      %p175 = scmp.eq.s32.totalorder %s32, 1
      %p176 = por %p174, %p175
      %p177 = scmp.ne.s32.totalorder %s168, %s169
      %p178 = scmp.eq.s32.totalorder %s32, 0
      %p179 = por %p177, %p178
      %p180 = scmp.ne.s32.totalorder %s168, %s169
      %p181 = scmp.eq.s32.totalorder %s33, 1
      %p182 = por %p180, %p181
      %p184 = scmp.ne.s32.totalorder %s169, %s183
      %p185 = scmp.eq.s32.totalorder %s33, 0
      %p186 = por %p184, %p185
      %s187 = ssub.s32 %s27, %s34
      %p188 = scmp.eq.s32.totalorder %s187, 0
      %s190 = sadd.s32 %s189, 1
      %s191 = scalar_select %p188, %s189, %s190
      %p194 = pneg %p188
      %p195 = scmp.eq.s32.totalorder %s27, 1
      %p196 = por %p194, %p195
      %p197 = scmp.ne.s32.totalorder %s189, %s192
      %p198 = scmp.eq.s32.totalorder %s27, 0
      %p199 = por %p197, %p198
      %p200 = scmp.ne.s32.totalorder %s189, %s192
      %p201 = scmp.eq.s32.totalorder %s32, 1
      %p202 = por %p200, %p201
      %p203 = scmp.ne.s32.totalorder %s192, %s193
      %p204 = scmp.eq.s32.totalorder %s32, 0
      %p205 = por %p203, %p204
      %p206 = scmp.ne.s32.totalorder %s192, %s193
      %p207 = scmp.eq.s32.totalorder %s33, 1
      %p208 = por %p206, %p207
      %p210 = scmp.ne.s32.totalorder %s193, %s209
      %p211 = scmp.eq.s32.totalorder %s33, 0
      %p212 = por %p210, %p211
      %s213 = ssub.s32 %s27, %s34
      %p214 = scmp.eq.s32.totalorder %s213, 0
      %s216 = sadd.s32 %s215, 1
      %s217 = scalar_select %p214, %s215, %s216
      %p220 = pneg %p214
      %p221 = scmp.eq.s32.totalorder %s27, 1
      %p222 = por %p220, %p221
      %p223 = scmp.ne.s32.totalorder %s215, %s218
      %p224 = scmp.eq.s32.totalorder %s27, 0
      %p225 = por %p223, %p224
      %p226 = scmp.ne.s32.totalorder %s215, %s218
      %p227 = scmp.eq.s32.totalorder %s32, 1
      %p228 = por %p226, %p227
      %p229 = scmp.ne.s32.totalorder %s218, %s219
      %p230 = scmp.eq.s32.totalorder %s32, 0
      %p231 = por %p229, %p230
      %p232 = scmp.ne.s32.totalorder %s218, %s219
      %p233 = scmp.eq.s32.totalorder %s33, 1
      %p234 = por %p232, %p233
      %p236 = scmp.ne.s32.totalorder %s219, %s235
      %p237 = scmp.eq.s32.totalorder %s33, 0
      %p238 = por %p236, %p237
      %s239 = ssub.s32 %s27, %s34
      %p240 = scmp.eq.s32.totalorder %s239, 0
      %s242 = sadd.s32 %s241, 1
      %s243 = scalar_select %p240, %s241, %s242
      %p246 = pneg %p240
      %p247 = scmp.eq.s32.totalorder %s27, 1
      %p248 = por %p246, %p247
      %p249 = scmp.ne.s32.totalorder %s241, %s244
      %p250 = scmp.eq.s32.totalorder %s27, 0
      %p251 = por %p249, %p250
      %p252 = scmp.ne.s32.totalorder %s241, %s244
      %p253 = scmp.eq.s32.totalorder %s32, 1
      %p254 = por %p252, %p253
      %p255 = scmp.ne.s32.totalorder %s244, %s245
      %p256 = scmp.eq.s32.totalorder %s32, 0
      %p257 = por %p255, %p256
      %p258 = scmp.ne.s32.totalorder %s244, %s245
      %p259 = scmp.eq.s32.totalorder %s33, 1
      %p260 = por %p258, %p259
      %p262 = scmp.ne.s32.totalorder %s245, %s261
      %p263 = scmp.eq.s32.totalorder %s33, 0
      %p264 = por %p262, %p263
      %p265 = scmp.le.s32.totalorder 1, %s27
      %p266 = scmp.lt.s32.totalorder %s27, 3
      %p267 = pnand %p265, %p266
      %p268 = pneg %p267
      // Predicated region
      $region9: #{tpu_custom_call.1} parent=5 // pred_check
        _
      $region10: #{tpu_custom_call.1} parent=5 // pred_check_branch
        %270 = sbr.rel (%p267) target = $region12
      $region11: #{tpu_custom_call.1} parent=5 // pred_region
        %s271 = ssub.s32 %s27, 1
        // Predicated region
        $region13: #{tpu_custom_call.1} parent=11 // pred_check
          %p272 = pneg %p74
        $region14: #{tpu_custom_call.1} parent=11 // pred_check_branch
          %274 = sbr.rel (%p272) target = $region16
        $region15: #{tpu_custom_call.1} parent=11 // pred_region
          %s276 = ssub.s32 3072, 3072
          %277 = vsyncadd [#allocation6], %s276
          %s278 = sshll.u32 [#allocation5], 4
          %s279 = int_to_ptr.vmem [resolvable:$true] %s278
          %284 = dma.hbm_to_vmem [thread:$0]  %s1, 3072, %s279, [#allocation6], 192, 192, 12
        $region16: #{tpu_custom_call.1} parent=11 // pred_fallthru
          _
        // Predicated region
        $region17: #{tpu_custom_call.1} parent=11 // pred_check
          %p285 = pneg %p95
        $region18: #{tpu_custom_call.1} parent=11 // pred_check_branch
          %287 = sbr.rel (%p285) target = $region20
        $region19: #{tpu_custom_call.1} parent=11 // pred_region
          _
        $region20: #{tpu_custom_call.1} parent=11 // pred_fallthru
          _
        // Predicated region
        $region21: #{tpu_custom_call.1} parent=11 // pred_check
          %p288 = pneg %p116
        $region22: #{tpu_custom_call.1} parent=11 // pred_check_branch
          %290 = sbr.rel (%p288) target = $region24
        $region23: #{tpu_custom_call.1} parent=11 // pred_region
          %s292 = ssub.s32 3072, 3072
          %293 = vsyncadd [#allocation6], %s292
          %s294 = sshll.u32 [#allocation7], 4
          %s295 = int_to_ptr.vmem [resolvable:$true] %s294
          %300 = dma.hbm_to_vmem [thread:$0]  %s3, 3072, %s295, [#allocation6], 64, 64, 4
        $region24: #{tpu_custom_call.1} parent=11 // pred_fallthru
          _
        // Predicated region
        $region25: #{tpu_custom_call.1} parent=11 // pred_check
          %p301 = pneg %p137
        $region26: #{tpu_custom_call.1} parent=11 // pred_check_branch
          %303 = sbr.rel (%p301) target = $region28
        $region27: #{tpu_custom_call.1} parent=11 // pred_region
          _
        $region28: #{tpu_custom_call.1} parent=11 // pred_fallthru
          _
        // Predicated region
        $region29: #{tpu_custom_call.1} parent=11 // pred_check
          %p304 = pneg %p158
        $region30: #{tpu_custom_call.1} parent=11 // pred_check_branch
          %306 = sbr.rel (%p304) target = $region32
        $region31: #{tpu_custom_call.1} parent=11 // pred_region
          %s308 = ssub.s32 1024, 1024
          %309 = vsyncadd [#allocation9], %s308
          %s310 = sshll.u32 [#allocation8], 4
          %s311 = int_to_ptr.vmem [resolvable:$true] %s310
          %316 = dma.hbm_to_vmem [thread:$0]  %s5, 1024, %s311, [#allocation9], 64, 64, 4
        $region32: #{tpu_custom_call.1} parent=11 // pred_fallthru
          _
        // Predicated region
        $region33: #{tpu_custom_call.1} parent=11 // pred_check
          %p317 = pneg %p179
        $region34: #{tpu_custom_call.1} parent=11 // pred_check_branch
          %319 = sbr.rel (%p317) target = $region36
        $region35: #{tpu_custom_call.1} parent=11 // pred_region
          _
        $region36: #{tpu_custom_call.1} parent=11 // pred_fallthru
          _
      $region12: #{tpu_custom_call.1} parent=5 // pred_fallthru
        _
      %p320 = scmp.lt.s32.totalorder %s27, 2
      // Predicated region
      $region37: #{tpu_custom_call.1} parent=5 // pred_check
        %p321 = pneg %p320
      $region38: #{tpu_custom_call.1} parent=5 // pred_check_branch
        %323 = sbr.rel (%p321) target = $region40
      $region39: #{tpu_custom_call.1} parent=5 // pred_region
        // Predicated region
        $region41: #{tpu_custom_call.1} parent=39 // pred_check
          %p324 = pneg %p47
        $region42: #{tpu_custom_call.1} parent=39 // pred_check_branch
          %326 = sbr.rel (%p324) target = $region44
        $region43: #{tpu_custom_call.1} parent=39 // pred_region
          %s327 = sand.u32 %s37, 1
          %s328 = scalar_lea.sflag [#allocation3], %s327
          %s329 = sand.u32 %s37, 1
          %s330 = smul.addr %s329, 4
          %s331 = scalar_lea.vmem [#allocation2], %s330
          %s333 = ssub.s32 64, 64
          %334 = vsyncadd %s328, %s333
          %s335 = smul.addr %s27, 64
          %s336 = scalar_lea.hbm %s0, %s335
          %s338 = sshll.u32 %s331, 4
          %s339 = int_to_ptr.vmem [resolvable:$true] %s338
          %341 = dma.hbm_to_vmem [thread:$0]  %s336, 64, %s339, %s328
        $region44: #{tpu_custom_call.1} parent=39 // pred_fallthru
          _
      $region40: #{tpu_custom_call.1} parent=5 // pred_fallthru
        _
      %p342 = scmp.le.s32.totalorder 1, %s27
      %p343 = scmp.lt.s32.totalorder %s27, 3
      %p344 = pnand %p342, %p343
      %p345 = pneg %p344
      // Predicated region
      $region45: #{tpu_custom_call.1} parent=5 // pred_check
        _
      $region46: #{tpu_custom_call.1} parent=5 // pred_check_branch
        %347 = sbr.rel (%p344) target = $region48
      $region47: #{tpu_custom_call.1} parent=5 // pred_region
        %s348 = ssub.s32 %s27, 1
        %s349 = sand.u32 %s40, 1
        %s350 = scalar_lea.sflag [#allocation3], %s349
        %s351 = sand.u32 %s40, 1
        %s352 = smul.addr %s351, 4
        %s353 = scalar_lea.vmem [#allocation2], %s352
        // Predicated region
        $region49: #{tpu_custom_call.1} parent=47 // pred_check
          %p354 = pneg %p53
        $region50: #{tpu_custom_call.1} parent=47 // pred_check_branch
          %356 = sbr.rel (%p354) target = $region52
        $region51: #{tpu_custom_call.1} parent=47 // pred_region
          %357 = dma.done %s350, 64
        $region52: #{tpu_custom_call.1} parent=47 // pred_fallthru
          _
        // Predicated region
        $region53: #{tpu_custom_call.1} parent=47 // pred_check
          %p358 = pneg %p74
        $region54: #{tpu_custom_call.1} parent=47 // pred_check_branch
          %360 = sbr.rel (%p358) target = $region56
        $region55: #{tpu_custom_call.1} parent=47 // pred_region
          %361 = dma.done [#allocation6], 3072
        $region56: #{tpu_custom_call.1} parent=47 // pred_fallthru
          _
        // Predicated region
        $region57: #{tpu_custom_call.1} parent=47 // pred_check
          %p362 = pneg %p116
        $region58: #{tpu_custom_call.1} parent=47 // pred_check_branch
          %364 = sbr.rel (%p362) target = $region60
        $region59: #{tpu_custom_call.1} parent=47 // pred_region
          %365 = dma.done [#allocation6], 3072
        $region60: #{tpu_custom_call.1} parent=47 // pred_fallthru
          _
        // Predicated region
        $region61: #{tpu_custom_call.1} parent=47 // pred_check
          %p366 = pneg %p158
        $region62: #{tpu_custom_call.1} parent=47 // pred_check_branch
          %368 = sbr.rel (%p366) target = $region64
        $region63: #{tpu_custom_call.1} parent=47 // pred_region
          %369 = dma.done [#allocation9], 1024
        $region64: #{tpu_custom_call.1} parent=47 // pred_fallthru
          _
        %s370 = sand.u32 %s40, 1
        %s371 = scalar_lea.sflag [#allocation3], %s370
        %s372 = sand.u32 %s40, 1
        %s373 = smul.addr %s372, 4
        %s374 = scalar_lea.vmem [#allocation2], %s373
        %p375 = pneg %p53
        %p376 = pneg %p50
        %p377 = pneg %p74
        %p378 = pneg %p71
        %p379 = pneg %p95
        %p380 = pneg %p92
        %p381 = pneg %p116
        %p382 = pneg %p113
        %p383 = pneg %p137
        %p384 = pneg %p134
        %p385 = pneg %p158
        %p386 = pneg %p155
        %p387 = pneg %p179
        %p388 = pneg %p176
        %p389 = pneg %p205
        %p390 = pneg %p202
        %s391 = sand.u32 %s192, 1
        %s392 = scalar_lea.sflag [#allocation4], %s391
        %s393 = sand.u32 %s192, 1
        %s394 = smul.addr %s393, 24
        %s395 = scalar_lea.vmem [#allocation10], %s394
        %p396 = pneg %p231
        %p397 = pneg %p228
        %s398 = sand.u32 %s32, 1
        %s399 = scalar_lea.sflag [#allocation12], %s398
        %s400 = sand.u32 %s218, 1
        %s401 = smul.addr %s400, 8
        %s402 = scalar_lea.vmem [#allocation11], %s401
        %p403 = pneg %p257
        %p404 = pneg %p254
        %s405 = sand.u32 %s32, 1
        %s406 = scalar_lea.sflag [#allocation12], %s405
        %s407 = sand.u32 %s244, 1
        %s408 = smul.addr %s407, 8
        %s409 = scalar_lea.vmem [#allocation13], %s408
        %v411 = vld [vmem:[%s353] sm:$0xf]
        %v412 = vld [vmem:[#allocation5] sm:$0xff]
        %v413 = vld [vmem:[#allocation5 + $0x8] sm:$0xf]
        %v414 = vld [vmem:[#allocation5 + $0xc] sm:$0xff]
        %v415 = vld [vmem:[#allocation5 + $0x14] sm:$0xf]
        %v416 = vld [vmem:[#allocation5 + $0x18] sm:$0xff]
        %v417 = vld [vmem:[#allocation5 + $0x20] sm:$0xf]
        %v418 = vld [vmem:[#allocation5 + $0x24] sm:$0xff]
        %v419 = vld [vmem:[#allocation5 + $0x2c] sm:$0xf]
        %v420 = vld [vmem:[#allocation5 + $0x30] sm:$0xff]
        %v421 = vld [vmem:[#allocation5 + $0x38] sm:$0xf]
        %v422 = vld [vmem:[#allocation5 + $0x3c] sm:$0xff]
        %v423 = vld [vmem:[#allocation5 + $0x44] sm:$0xf]
        %v424 = vld [vmem:[#allocation5 + $0x48] sm:$0xff]
        %v425 = vld [vmem:[#allocation5 + $0x50] sm:$0xf]
        %v426 = vld [vmem:[#allocation5 + $0x54] sm:$0xff]
        %v427 = vld [vmem:[#allocation5 + $0x5c] sm:$0xf]
        %v428 = vld [vmem:[#allocation5 + $0x60] sm:$0xff]
        %v429 = vld [vmem:[#allocation5 + $0x68] sm:$0xf]
        %v430 = vld [vmem:[#allocation5 + $0x6c] sm:$0xff]
        %v431 = vld [vmem:[#allocation5 + $0x74] sm:$0xf]
        %v432 = vld [vmem:[#allocation5 + $0x78] sm:$0xff]
        %v433 = vld [vmem:[#allocation5 + $0x80] sm:$0xf]
        %v434 = vld [vmem:[#allocation5 + $0x84] sm:$0xff]
        %v435 = vld [vmem:[#allocation5 + $0x8c] sm:$0xf]
        %v436 = vld [vmem:[#allocation5 + $0x90] sm:$0xff]
        %v437 = vld [vmem:[#allocation5 + $0x98] sm:$0xf]
        %v438 = vld [vmem:[#allocation5 + $0x9c] sm:$0xff]
        %v439 = vld [vmem:[#allocation5 + $0xa4] sm:$0xf]
        %v440 = vld [vmem:[#allocation5 + $0xa8] sm:$0xff]
        %v441 = vld [vmem:[#allocation5 + $0xb0] sm:$0xf]
        %v442 = vld [vmem:[#allocation5 + $0xb4] sm:$0xff]
        %v443 = vld [vmem:[#allocation5 + $0xbc] sm:$0xf]
        %v444 = vld [vmem:[%s2] sm:$0x7]
        %v446 = vlaneseq
        %v447 = vshrl.u32 %v446, 7
        %v448 = vsub.s32 0, %v447
        %v449 = vrot.slane %v444, %v448
        %v450 = vlaneseq
        %v451 = vshrl.u32 %v450, 7
        %v452 = vsub.s32 1, %v451
        %v453 = vrot.slane %v444, %v452
        %v454 = vlaneseq
        %v455 = vshrl.u32 %v454, 7
        %v456 = vsub.s32 2, %v455
        %v457 = vrot.slane %v444, %v456
        %v493 = vunpack.c.l.b16 %v412
        %v494 = vunpack.c.h.b16 %v412
        %v495 = vunpack.c.l.b16 %v413
        %v496 = vunpack.c.l.b16 %v414
        %v497 = vunpack.c.h.b16 %v414
        %v498 = vunpack.c.l.b16 %v415
        %v499 = vunpack.c.l.b16 %v416
        %v500 = vunpack.c.h.b16 %v416
        %v501 = vunpack.c.l.b16 %v417
        %v502 = vunpack.c.l.b16 %v418
        %v503 = vunpack.c.h.b16 %v418
        %v504 = vunpack.c.l.b16 %v419
        %v505 = vunpack.c.l.b16 %v420
        %v506 = vunpack.c.h.b16 %v420
        %v507 = vunpack.c.l.b16 %v421
        %v508 = vunpack.c.l.b16 %v422
        %v509 = vunpack.c.h.b16 %v422
        %v510 = vunpack.c.l.b16 %v423
        %v511 = vunpack.c.l.b16 %v424
        %v512 = vunpack.c.h.b16 %v424
        %v513 = vunpack.c.l.b16 %v425
        %v514 = vunpack.c.l.b16 %v426
        %v515 = vunpack.c.h.b16 %v426
        %v516 = vunpack.c.l.b16 %v427
        %v517 = vunpack.c.l.b16 %v428
        %v518 = vunpack.c.h.b16 %v428
        %v519 = vunpack.c.l.b16 %v429
        %v520 = vunpack.c.l.b16 %v430
        %v521 = vunpack.c.h.b16 %v430
        %v522 = vunpack.c.l.b16 %v431
        %v523 = vunpack.c.l.b16 %v432
        %v524 = vunpack.c.h.b16 %v432
        %v525 = vunpack.c.l.b16 %v433
        %v526 = vunpack.c.l.b16 %v434
        %v527 = vunpack.c.h.b16 %v434
        %v528 = vunpack.c.l.b16 %v435
        %v529 = vunpack.c.l.b16 %v436
        %v530 = vunpack.c.h.b16 %v436
        %v531 = vunpack.c.l.b16 %v437
        %v532 = vunpack.c.l.b16 %v438
        %v533 = vunpack.c.h.b16 %v438
        %v534 = vunpack.c.l.b16 %v439
        %v535 = vunpack.c.l.b16 %v440
        %v536 = vunpack.c.h.b16 %v440
        %v537 = vunpack.c.l.b16 %v441
        %v538 = vunpack.c.l.b16 %v442
        %v539 = vunpack.c.h.b16 %v442
        %v540 = vunpack.c.l.b16 %v443
        %v541 = vpack.c.b16 %v496, %v493
        %v542 = vpack.c.b16 %v497, %v494
        %v543 = vpack.c.b16 %v498, %v495
        %v544 = vpack.c.b16 %v502, %v499
        %v545 = vpack.c.b16 %v503, %v500
        %v546 = vpack.c.b16 %v504, %v501
        %v547 = vpack.c.b16 %v508, %v505
        %v548 = vpack.c.b16 %v509, %v506
        %v549 = vpack.c.b16 %v510, %v507
        %v550 = vpack.c.b16 %v514, %v511
        %v551 = vpack.c.b16 %v515, %v512
        %v552 = vpack.c.b16 %v516, %v513
        %v553 = vpack.c.b16 %v520, %v517
        %v554 = vpack.c.b16 %v521, %v518
        %v555 = vpack.c.b16 %v522, %v519
        %v556 = vpack.c.b16 %v526, %v523
        %v557 = vpack.c.b16 %v527, %v524
        %v558 = vpack.c.b16 %v528, %v525
        %v559 = vpack.c.b16 %v532, %v529
        %v560 = vpack.c.b16 %v533, %v530
        %v561 = vpack.c.b16 %v534, %v531
        %v562 = vpack.c.b16 %v538, %v535
        %v563 = vpack.c.b16 %v539, %v536
        %v564 = vpack.c.b16 %v540, %v537
        %589 = vmatprep.subr.bf16.mxu0 %v563
        %590 = vmatpush1.bf16.msra.mxu0 %v562
        %591 = vmatprep.subr.bf16.mxu0 %v560
        %592 = vmatpush1.bf16.msra.mxu0 %v559
        %593 = vmatprep.subr.bf16.mxu0 %v557
        %594 = vmatpush1.bf16.msra.mxu0 %v556
        %595 = vmatprep.subr.bf16.mxu0 %v554
        %596 = vmatpush1.bf16.msra.mxu0 %v553
        %597 = vmatprep.subr.bf16.mxu0 %v551
        %598 = vmatpush1.bf16.msra.mxu0 %v550
        %599 = vmatprep.subr.bf16.mxu0 %v548
        %600 = vmatpush1.bf16.msra.mxu0 %v547
        %601 = vmatprep.subr.bf16.mxu0 %v545
        %602 = vmatpush1.bf16.msra.mxu0 %v544
        %603 = vmatprep.subr.bf16.mxu0 %v542
        %604 = vmatpush1.bf16.msra.mxu0 %v541
        %605 = vmatprep.subr.bf16.mxu0 0
        %606 = vmatpush2.bf16.msra.mxu0 0
        %607 = vmatprep.subr.bf16.mxu0 0
        %608 = vmatpush2.bf16.msra.mxu0 0
        %609 = vmatprep.subr.bf16.mxu0 0
        %610 = vmatpush2.bf16.msra.mxu0 0
        %611 = vmatprep.subr.bf16.mxu0 0
        %612 = vmatpush2.bf16.msra.mxu0 0
        %613 = vmatprep.subr.bf16.mxu0 0
        %614 = vmatpush2.bf16.msra.mxu0 0
        %615 = vmatprep.subr.bf16.mxu0 0
        %616 = vmatpush2.bf16.msra.mxu0 0
        %617 = vmatprep.subr.bf16.mxu0 0
        %618 = vmatpush2.bf16.msra.mxu0 0
        %619 = vmatprep.subr.bf16.mxu0 0
        %620 = vmatpush2.bf16.msra.mxu0 0
        %621 = vmatprep.mubr.bf16.mxu0 0
        %622 = vmatmul.mubr.bf16.gmra.mxu0 %v411
        %v623 = vpop.f32.mrf.mxu0
        %v624 = vadd.f32 %v449, %v623
        %v625 = vpop.f32.mrf.mxu0
        %v626 = vadd.f32 %v453, %v625
        %v627 = vpop.f32.mrf.mxu0
        %v628 = vpop.f32.mrf.mxu0
        %629 = vdwg.mxu0
        %630 = vmatprep.subr.bf16.mxu0 0
        %631 = vmatpush1.bf16.msra.mxu0 %v564
        %632 = vmatprep.subr.bf16.mxu0 0
        %633 = vmatpush1.bf16.msra.mxu0 %v561
        %634 = vmatprep.subr.bf16.mxu0 0
        %635 = vmatpush1.bf16.msra.mxu0 %v558
        %636 = vmatprep.subr.bf16.mxu0 0
        %637 = vmatpush1.bf16.msra.mxu0 %v555
        %638 = vmatprep.subr.bf16.mxu0 0
        %639 = vmatpush1.bf16.msra.mxu0 %v552
        %640 = vmatprep.subr.bf16.mxu0 0
        %641 = vmatpush1.bf16.msra.mxu0 %v549
        %642 = vmatprep.subr.bf16.mxu0 0
        %643 = vmatpush1.bf16.msra.mxu0 %v546
        %644 = vmatprep.subr.bf16.mxu0 0
        %645 = vmatpush1.bf16.msra.mxu0 %v543
        %646 = vmatprep.subr.bf16.mxu0 0
        %647 = vmatpush2.bf16.msra.mxu0 0
        %648 = vmatprep.subr.bf16.mxu0 0
        %649 = vmatpush2.bf16.msra.mxu0 0
        %650 = vmatprep.subr.bf16.mxu0 0
        %651 = vmatpush2.bf16.msra.mxu0 0
        %652 = vmatprep.subr.bf16.mxu0 0
        %653 = vmatpush2.bf16.msra.mxu0 0
        %654 = vmatprep.subr.bf16.mxu0 0
        %655 = vmatpush2.bf16.msra.mxu0 0
        %656 = vmatprep.subr.bf16.mxu0 0
        %657 = vmatpush2.bf16.msra.mxu0 0
        %658 = vmatprep.subr.bf16.mxu0 0
        %659 = vmatpush2.bf16.msra.mxu0 0
        %660 = vmatprep.subr.bf16.mxu0 0
        %661 = vmatpush2.bf16.msra.mxu0 0
        %662 = vmatprep.mubr.bf16.mxu0 0
        %663 = vmatmul.mubr.bf16.gmra.mxu0 %v411
        %v664 = vpop.f32.mrf.mxu0
        %v665 = vadd.f32 %v457, %v664
        %v666 = vpop.f32.mrf.mxu0
        %v667 = vpop.f32.mrf.mxu0
        %v668 = vpop.f32.mrf.mxu0
        %669 = vdwg.mxu0
        %v670 = vtanh.pop %v624
        %v671 = vtanh.pop %v626
        %v672 = vtanh.pop %v665
        %673 = vst [vmem:[%s395] sm:$0xff] %v670
        %674 = vst [vmem:[%s395 + $0x8] sm:$0xff] %v671
        %675 = vst [vmem:[%s395 + $0x10] sm:$0xff] %v672
        %v676 = vpack.c.bf16 %v670, %v670
        %v677 = vpack.c.bf16 %v671, %v671
        %v678 = vpack.c.bf16 %v672, %v672
        %v679 = vld [vmem:[#allocation7] sm:$0xf]
        %v680 = vld [vmem:[#allocation7 + $0x4] sm:$0xf]
        %v681 = vld [vmem:[#allocation7 + $0x8] sm:$0xf]
        %v682 = vld [vmem:[#allocation7 + $0xc] sm:$0xf]
        %v683 = vld [vmem:[#allocation7 + $0x10] sm:$0xf]
        %v684 = vld [vmem:[#allocation7 + $0x14] sm:$0xf]
        %v685 = vld [vmem:[#allocation7 + $0x18] sm:$0xf]
        %v686 = vld [vmem:[#allocation7 + $0x1c] sm:$0xf]
        %v687 = vld [vmem:[#allocation7 + $0x20] sm:$0xf]
        %v688 = vld [vmem:[#allocation7 + $0x24] sm:$0xf]
        %v689 = vld [vmem:[#allocation7 + $0x28] sm:$0xf]
        %v690 = vld [vmem:[#allocation7 + $0x2c] sm:$0xf]
        %v691 = vld [vmem:[#allocation7 + $0x30] sm:$0xf]
        %v692 = vld [vmem:[#allocation7 + $0x34] sm:$0xf]
        %v693 = vld [vmem:[#allocation7 + $0x38] sm:$0xf]
        %v694 = vld [vmem:[#allocation7 + $0x3c] sm:$0xf]
        %v695 = vld [vmem:[#allocation7 + $0x40] sm:$0xf]
        %v696 = vld [vmem:[#allocation7 + $0x44] sm:$0xf]
        %v697 = vld [vmem:[#allocation7 + $0x48] sm:$0xf]
        %v698 = vld [vmem:[#allocation7 + $0x4c] sm:$0xf]
        %v699 = vld [vmem:[#allocation7 + $0x50] sm:$0xf]
        %v700 = vld [vmem:[#allocation7 + $0x54] sm:$0xf]
        %v701 = vld [vmem:[#allocation7 + $0x58] sm:$0xf]
        %v702 = vld [vmem:[#allocation7 + $0x5c] sm:$0xf]
        %v703 = vld [vmem:[#allocation7 + $0x60] sm:$0xf]
        %v704 = vld [vmem:[#allocation7 + $0x64] sm:$0xf]
        %v705 = vld [vmem:[#allocation7 + $0x68] sm:$0xf]
        %v706 = vld [vmem:[#allocation7 + $0x6c] sm:$0xf]
        %v707 = vld [vmem:[#allocation7 + $0x70] sm:$0xf]
        %v708 = vld [vmem:[#allocation7 + $0x74] sm:$0xf]
        %v709 = vld [vmem:[#allocation7 + $0x78] sm:$0xf]
        %v710 = vld [vmem:[#allocation7 + $0x7c] sm:$0xf]
        %v711 = vld [vmem:[#allocation7 + $0x80] sm:$0xf]
        %v712 = vld [vmem:[#allocation7 + $0x84] sm:$0xf]
        %v713 = vld [vmem:[#allocation7 + $0x88] sm:$0xf]
        %v714 = vld [vmem:[#allocation7 + $0x8c] sm:$0xf]
        %v715 = vld [vmem:[#allocation7 + $0x90] sm:$0xf]
        %v716 = vld [vmem:[#allocation7 + $0x94] sm:$0xf]
        %v717 = vld [vmem:[#allocation7 + $0x98] sm:$0xf]
        %v718 = vld [vmem:[#allocation7 + $0x9c] sm:$0xf]
        %v719 = vld [vmem:[#allocation7 + $0xa0] sm:$0xf]
        %v720 = vld [vmem:[#allocation7 + $0xa4] sm:$0xf]
        %v721 = vld [vmem:[#allocation7 + $0xa8] sm:$0xf]
        %v722 = vld [vmem:[#allocation7 + $0xac] sm:$0xf]
        %v723 = vld [vmem:[#allocation7 + $0xb0] sm:$0xf]
        %v724 = vld [vmem:[#allocation7 + $0xb4] sm:$0xf]
        %v725 = vld [vmem:[#allocation7 + $0xb8] sm:$0xf]
        %v726 = vld [vmem:[#allocation7 + $0xbc] sm:$0xf]
        %v727 = vld [vmem:[%s4] sm:$0x1]
        %v729 = vlaneseq
        %v730 = vshrl.u32 %v729, 7
        %v731 = vsub.s32 0, %v730
        %v732 = vrot.slane %v727, %v731
        %v782 = vunpack.c.l.b16 %v679
        %v783 = vunpack.c.l.b16 %v680
        %v784 = vunpack.c.l.b16 %v681
        %v785 = vunpack.c.l.b16 %v682
        %v786 = vunpack.c.l.b16 %v683
        %v787 = vunpack.c.l.b16 %v684
        %v788 = vunpack.c.l.b16 %v685
        %v789 = vunpack.c.l.b16 %v686
        %v790 = vunpack.c.l.b16 %v687
        %v791 = vunpack.c.l.b16 %v688
        %v792 = vunpack.c.l.b16 %v689
        %v793 = vunpack.c.l.b16 %v690
        %v794 = vunpack.c.l.b16 %v691
        %v795 = vunpack.c.l.b16 %v692
        %v796 = vunpack.c.l.b16 %v693
        %v797 = vunpack.c.l.b16 %v694
        %v798 = vunpack.c.l.b16 %v695
        %v799 = vunpack.c.l.b16 %v696
        %v800 = vunpack.c.l.b16 %v697
        %v801 = vunpack.c.l.b16 %v698
        %v802 = vunpack.c.l.b16 %v699
        %v803 = vunpack.c.l.b16 %v700
        %v804 = vunpack.c.l.b16 %v701
        %v805 = vunpack.c.l.b16 %v702
        %v806 = vunpack.c.l.b16 %v703
        %v807 = vunpack.c.l.b16 %v704
        %v808 = vunpack.c.l.b16 %v705
        %v809 = vunpack.c.l.b16 %v706
        %v810 = vunpack.c.l.b16 %v707
        %v811 = vunpack.c.l.b16 %v708
        %v812 = vunpack.c.l.b16 %v709
        %v813 = vunpack.c.l.b16 %v710
        %v814 = vunpack.c.l.b16 %v711
        %v815 = vunpack.c.l.b16 %v712
        %v816 = vunpack.c.l.b16 %v713
        %v817 = vunpack.c.l.b16 %v714
        %v818 = vunpack.c.l.b16 %v715
        %v819 = vunpack.c.l.b16 %v716
        %v820 = vunpack.c.l.b16 %v717
        %v821 = vunpack.c.l.b16 %v718
        %v822 = vunpack.c.l.b16 %v719
        %v823 = vunpack.c.l.b16 %v720
        %v824 = vunpack.c.l.b16 %v721
        %v825 = vunpack.c.l.b16 %v722
        %v826 = vunpack.c.l.b16 %v723
        %v827 = vunpack.c.l.b16 %v724
        %v828 = vunpack.c.l.b16 %v725
        %v829 = vunpack.c.l.b16 %v726
        %v830 = vpack.c.b16 %v783, %v782
        %v831 = vpack.c.b16 %v785, %v784
        %v832 = vpack.c.b16 %v787, %v786
        %v833 = vpack.c.b16 %v789, %v788
        %v834 = vpack.c.b16 %v791, %v790
        %v835 = vpack.c.b16 %v793, %v792
        %v836 = vpack.c.b16 %v795, %v794
        %v837 = vpack.c.b16 %v797, %v796
        %v838 = vpack.c.b16 %v799, %v798
        %v839 = vpack.c.b16 %v801, %v800
        %v840 = vpack.c.b16 %v803, %v802
        %v841 = vpack.c.b16 %v805, %v804
        %v842 = vpack.c.b16 %v807, %v806
        %v843 = vpack.c.b16 %v809, %v808
        %v844 = vpack.c.b16 %v811, %v810
        %v845 = vpack.c.b16 %v813, %v812
        %v846 = vpack.c.b16 %v815, %v814
        %v847 = vpack.c.b16 %v817, %v816
        %v848 = vpack.c.b16 %v819, %v818
        %v849 = vpack.c.b16 %v821, %v820
        %v850 = vpack.c.b16 %v823, %v822
        %v851 = vpack.c.b16 %v825, %v824
        %v852 = vpack.c.b16 %v827, %v826
        %v853 = vpack.c.b16 %v829, %v828
        %878 = vmatprep.subr.bf16.mxu0 0
        %879 = vmatpush1.bf16.msra.mxu0 %v837
        %880 = vmatprep.subr.bf16.mxu0 0
        %881 = vmatpush1.bf16.msra.mxu0 %v836
        %882 = vmatprep.subr.bf16.mxu0 0
        %883 = vmatpush1.bf16.msra.mxu0 %v835
        %884 = vmatprep.subr.bf16.mxu0 0
        %885 = vmatpush1.bf16.msra.mxu0 %v834
        %886 = vmatprep.subr.bf16.mxu0 0
        %887 = vmatpush1.bf16.msra.mxu0 %v833
        %888 = vmatprep.subr.bf16.mxu0 0
        %889 = vmatpush1.bf16.msra.mxu0 %v832
        %890 = vmatprep.subr.bf16.mxu0 0
        %891 = vmatpush1.bf16.msra.mxu0 %v831
        %892 = vmatprep.subr.bf16.mxu0 0
        %893 = vmatpush1.bf16.msra.mxu0 %v830
        %894 = vmatprep.subr.bf16.mxu0 0
        %895 = vmatpush2.bf16.msra.mxu0 %v845
        %896 = vmatprep.subr.bf16.mxu0 0
        %897 = vmatpush2.bf16.msra.mxu0 %v844
        %898 = vmatprep.subr.bf16.mxu0 0
        %899 = vmatpush2.bf16.msra.mxu0 %v843
        %900 = vmatprep.subr.bf16.mxu0 0
        %901 = vmatpush2.bf16.msra.mxu0 %v842
        %902 = vmatprep.subr.bf16.mxu0 0
        %903 = vmatpush2.bf16.msra.mxu0 %v841
        %904 = vmatprep.subr.bf16.mxu0 0
        %905 = vmatpush2.bf16.msra.mxu0 %v840
        %906 = vmatprep.subr.bf16.mxu0 0
        %907 = vmatpush2.bf16.msra.mxu0 %v839
        %908 = vmatprep.subr.bf16.mxu0 0
        %909 = vmatpush2.bf16.msra.mxu0 %v838
        %910 = vmatprep.mubr.bf16.mxu0 %v677
        %911 = vmatmul.mubr.bf16.gmra.mxu0 %v676
        %v912 = vpop.f32.mrf.mxu0
        %v913 = vadd.f32 %v732, %v912
        %v914 = vpop.f32.mrf.mxu0
        %v915 = vpop.f32.mrf.mxu0
        %v916 = vpop.f32.mrf.mxu0
        %917 = vdwg.mxu0
        %918 = vmatprep.subr.bf16.mxu0 0
        %919 = vmatpush1.bf16.msra.mxu0 %v853
        %920 = vmatprep.subr.bf16.mxu0 0
        %921 = vmatpush1.bf16.msra.mxu0 %v852
        %922 = vmatprep.subr.bf16.mxu0 0
        %923 = vmatpush1.bf16.msra.mxu0 %v851
        %924 = vmatprep.subr.bf16.mxu0 0
        %925 = vmatpush1.bf16.msra.mxu0 %v850
        %926 = vmatprep.subr.bf16.mxu0 0
        %927 = vmatpush1.bf16.msra.mxu0 %v849
        %928 = vmatprep.subr.bf16.mxu0 0
        %929 = vmatpush1.bf16.msra.mxu0 %v848
        %930 = vmatprep.subr.bf16.mxu0 0
        %931 = vmatpush1.bf16.msra.mxu0 %v847
        %932 = vmatprep.subr.bf16.mxu0 0
        %933 = vmatpush1.bf16.msra.mxu0 %v846
        %934 = vmatprep.subr.bf16.mxu0 0
        %935 = vmatpush2.bf16.msra.mxu0 0
        %936 = vmatprep.subr.bf16.mxu0 0
        %937 = vmatpush2.bf16.msra.mxu0 0
        %938 = vmatprep.subr.bf16.mxu0 0
        %939 = vmatpush2.bf16.msra.mxu0 0
        %940 = vmatprep.subr.bf16.mxu0 0
        %941 = vmatpush2.bf16.msra.mxu0 0
        %942 = vmatprep.subr.bf16.mxu0 0
        %943 = vmatpush2.bf16.msra.mxu0 0
        %944 = vmatprep.subr.bf16.mxu0 0
        %945 = vmatpush2.bf16.msra.mxu0 0
        %946 = vmatprep.subr.bf16.mxu0 0
        %947 = vmatpush2.bf16.msra.mxu0 0
        %948 = vmatprep.subr.bf16.mxu0 0
        %949 = vmatpush2.bf16.msra.mxu0 0
        %950 = vmatprep.mubr.bf16.mxu0 0
        %951 = vmatmul.mubr.bf16.gmra.mxu0 %v678
        %v952 = vpop.f32.mrf.mxu0
        %v953 = vadd.f32 %v913, %v952
        %v954 = vpop.f32.mrf.mxu0
        %v955 = vpop.f32.mrf.mxu0
        %v956 = vpop.f32.mrf.mxu0
        %957 = vdwg.mxu0
        %v958 = vtanh.pop %v953
        %959 = vst [vmem:[%s402] sm:$0xff] %v958
        %v960 = vpack.c.bf16 %v958, %v958
        %v961 = vld [vmem:[#allocation8] sm:$0xf]
        %v962 = vld [vmem:[#allocation8 + $0x4] sm:$0xf]
        %v963 = vld [vmem:[#allocation8 + $0x8] sm:$0xf]
        %v964 = vld [vmem:[#allocation8 + $0xc] sm:$0xf]
        %v965 = vld [vmem:[#allocation8 + $0x10] sm:$0xf]
        %v966 = vld [vmem:[#allocation8 + $0x14] sm:$0xf]
        %v967 = vld [vmem:[#allocation8 + $0x18] sm:$0xf]
        %v968 = vld [vmem:[#allocation8 + $0x1c] sm:$0xf]
        %v969 = vld [vmem:[#allocation8 + $0x20] sm:$0xf]
        %v970 = vld [vmem:[#allocation8 + $0x24] sm:$0xf]
        %v971 = vld [vmem:[#allocation8 + $0x28] sm:$0xf]
        %v972 = vld [vmem:[#allocation8 + $0x2c] sm:$0xf]
        %v973 = vld [vmem:[#allocation8 + $0x30] sm:$0xf]
        %v974 = vld [vmem:[#allocation8 + $0x34] sm:$0xf]
        %v975 = vld [vmem:[#allocation8 + $0x38] sm:$0xf]
        %v976 = vld [vmem:[#allocation8 + $0x3c] sm:$0xf]
        %v977 = vld [vmem:[%s6] sm:$0x1]
        %v979 = vlaneseq
        %v980 = vshrl.u32 %v979, 7
        %v981 = vsub.s32 0, %v980
        %v982 = vrot.slane %v977, %v981
        %v1000 = vunpack.c.l.b16 %v961
        %v1001 = vunpack.c.l.b16 %v962
        %v1002 = vunpack.c.l.b16 %v963
        %v1003 = vunpack.c.l.b16 %v964
        %v1004 = vunpack.c.l.b16 %v965
        %v1005 = vunpack.c.l.b16 %v966
        %v1006 = vunpack.c.l.b16 %v967
        %v1007 = vunpack.c.l.b16 %v968
        %v1008 = vunpack.c.l.b16 %v969
        %v1009 = vunpack.c.l.b16 %v970
        %v1010 = vunpack.c.l.b16 %v971
        %v1011 = vunpack.c.l.b16 %v972
        %v1012 = vunpack.c.l.b16 %v973
        %v1013 = vunpack.c.l.b16 %v974
        %v1014 = vunpack.c.l.b16 %v975
        %v1015 = vunpack.c.l.b16 %v976
        %v1016 = vpack.c.b16 %v1001, %v1000
        %v1017 = vpack.c.b16 %v1003, %v1002
        %v1018 = vpack.c.b16 %v1005, %v1004
        %v1019 = vpack.c.b16 %v1007, %v1006
        %v1020 = vpack.c.b16 %v1009, %v1008
        %v1021 = vpack.c.b16 %v1011, %v1010
        %v1022 = vpack.c.b16 %v1013, %v1012
        %v1023 = vpack.c.b16 %v1015, %v1014
        %1032 = vmatprep.subr.bf16.mxu0 0
        %1033 = vmatpush1.bf16.msra.mxu0 %v1023
        %1034 = vmatprep.subr.bf16.mxu0 0
        %1035 = vmatpush1.bf16.msra.mxu0 %v1022
        %1036 = vmatprep.subr.bf16.mxu0 0
        %1037 = vmatpush1.bf16.msra.mxu0 %v1021
        %1038 = vmatprep.subr.bf16.mxu0 0
        %1039 = vmatpush1.bf16.msra.mxu0 %v1020
        %1040 = vmatprep.subr.bf16.mxu0 0
        %1041 = vmatpush1.bf16.msra.mxu0 %v1019
        %1042 = vmatprep.subr.bf16.mxu0 0
        %1043 = vmatpush1.bf16.msra.mxu0 %v1018
        %1044 = vmatprep.subr.bf16.mxu0 0
        %1045 = vmatpush1.bf16.msra.mxu0 %v1017
        %1046 = vmatprep.subr.bf16.mxu0 0
        %1047 = vmatpush1.bf16.msra.mxu0 %v1016
        %1048 = vmatprep.subr.bf16.mxu0 0
        %1049 = vmatpush2.bf16.msra.mxu0 0
        %1050 = vmatprep.subr.bf16.mxu0 0
        %1051 = vmatpush2.bf16.msra.mxu0 0
        %1052 = vmatprep.subr.bf16.mxu0 0
        %1053 = vmatpush2.bf16.msra.mxu0 0
        %1054 = vmatprep.subr.bf16.mxu0 0
        %1055 = vmatpush2.bf16.msra.mxu0 0
        %1056 = vmatprep.subr.bf16.mxu0 0
        %1057 = vmatpush2.bf16.msra.mxu0 0
        %1058 = vmatprep.subr.bf16.mxu0 0
        %1059 = vmatpush2.bf16.msra.mxu0 0
        %1060 = vmatprep.subr.bf16.mxu0 0
        %1061 = vmatpush2.bf16.msra.mxu0 0
        %1062 = vmatprep.subr.bf16.mxu0 0
        %1063 = vmatpush2.bf16.msra.mxu0 0
        %1064 = vmatprep.mubr.bf16.mxu0 0
        %1065 = vmatmul.mubr.bf16.gmra.mxu0 %v960
        %v1066 = vpop.f32.mrf.mxu0
        %v1067 = vadd.f32 %v982, %v1066
        %v1068 = vpop.f32.mrf.mxu0
        %v1069 = vpop.f32.mrf.mxu0
        %v1070 = vpop.f32.mrf.mxu0
        %1071 = vdwg.mxu0
        %1072 = vst [vmem:[%s409] sm:$0xff] %v1067
        %s1073 = sand.u32 %s192, 1
        %s1074 = scalar_lea.sflag [#allocation4], %s1073
        %s1075 = sand.u32 %s192, 1
        %s1076 = smul.addr %s1075, 24
        %s1077 = scalar_lea.vmem [#allocation10], %s1076
        %s1078 = sand.u32 %s32, 1
        %s1079 = scalar_lea.sflag [#allocation12], %s1078
        %s1080 = sand.u32 %s218, 1
        %s1081 = smul.addr %s1080, 8
        %s1082 = scalar_lea.vmem [#allocation11], %s1081
        %s1083 = sand.u32 %s32, 1
        %s1084 = scalar_lea.sflag [#allocation12], %s1083
        %s1085 = sand.u32 %s244, 1
        %s1086 = smul.addr %s1085, 8
        %s1087 = scalar_lea.vmem [#allocation13], %s1086
        // Predicated region
        $region65: #{tpu_custom_call.1} parent=47 // pred_check
          %p1088 = pneg %p202
        $region66: #{tpu_custom_call.1} parent=47 // pred_check_branch
          %1090 = sbr.rel (%p1088) target = $region68
        $region67: #{tpu_custom_call.1} parent=47 // pred_region
          %s1092 = ssub.s32 384, 384
          %1093 = vsyncadd %s1074, %s1092
          %s1094 = smul.addr %s32, 3
          %s1095 = smul.addr %s1094, 128
          %s1096 = scalar_lea.hbm %s7, %s1095
          %s1098 = sshll.u32 %s1077, 4
          %s1099 = int_to_ptr.vmem [resolvable:$true] %s1098
          %1101 = dma.vmem_to_hbm [thread:$0]  %s1099, 384, %s1096, %s1074
        $region68: #{tpu_custom_call.1} parent=47 // pred_fallthru
          _
        // Predicated region
        $region69: #{tpu_custom_call.1} parent=47 // pred_check
          %p1102 = pneg %p228
        $region70: #{tpu_custom_call.1} parent=47 // pred_check_branch
          %1104 = sbr.rel (%p1102) target = $region72
        $region71: #{tpu_custom_call.1} parent=47 // pred_region
          %s1106 = ssub.s32 128, 128
          %1107 = vsyncadd %s1079, %s1106
          %s1108 = smul.addr %s32, 128
          %s1109 = scalar_lea.hbm %s8, %s1108
          %s1111 = sshll.u32 %s1082, 4
          %s1112 = int_to_ptr.vmem [resolvable:$true] %s1111
          %1114 = dma.vmem_to_hbm [thread:$0]  %s1112, 128, %s1109, %s1079
        $region72: #{tpu_custom_call.1} parent=47 // pred_fallthru
          _
        // Predicated region
        $region73: #{tpu_custom_call.1} parent=47 // pred_check
          %p1115 = pneg %p254
        $region74: #{tpu_custom_call.1} parent=47 // pred_check_branch
          %1117 = sbr.rel (%p1115) target = $region76
        $region75: #{tpu_custom_call.1} parent=47 // pred_region
          %s1119 = ssub.s32 128, 128
          %1120 = vsyncadd %s1084, %s1119
          %s1121 = smul.addr %s32, 128
          %s1122 = scalar_lea.hbm %s9, %s1121
          %s1124 = sshll.u32 %s1087, 4
          %s1125 = int_to_ptr.vmem [resolvable:$true] %s1124
          %1127 = dma.vmem_to_hbm [thread:$0]  %s1125, 128, %s1122, %s1084
        $region76: #{tpu_custom_call.1} parent=47 // pred_fallthru
          _
      $region48: #{tpu_custom_call.1} parent=5 // pred_fallthru
        _
      %p1128 = scmp.le.s32.totalorder 2, %s27
      // Predicated region
      $region77: #{tpu_custom_call.1} parent=5 // pred_check
        %p1129 = pneg %p1128
      $region78: #{tpu_custom_call.1} parent=5 // pred_check_branch
        %1131 = sbr.rel (%p1129) target = $region80
      $region79: #{tpu_custom_call.1} parent=5 // pred_region
        %s1132 = ssub.s32 %s27, 2
        // Predicated region
        $region81: #{tpu_custom_call.1} parent=79 // pred_check
          %p1133 = pneg %p208
        $region82: #{tpu_custom_call.1} parent=79 // pred_check_branch
          %1135 = sbr.rel (%p1133) target = $region84
        $region83: #{tpu_custom_call.1} parent=79 // pred_region
          %s1136 = sand.u32 %s193, 1
          %s1137 = scalar_lea.sflag [#allocation4], %s1136
          %s1138 = sand.u32 %s193, 1
          %s1139 = smul.addr %s1138, 24
          %s1140 = scalar_lea.vmem [#allocation10], %s1139
          %1141 = dma.done %s1137, 384
        $region84: #{tpu_custom_call.1} parent=79 // pred_fallthru
          _
        // Predicated region
        $region85: #{tpu_custom_call.1} parent=79 // pred_check
          %p1142 = pneg %p234
        $region86: #{tpu_custom_call.1} parent=79 // pred_check_branch
          %1144 = sbr.rel (%p1142) target = $region88
        $region87: #{tpu_custom_call.1} parent=79 // pred_region
          %s1145 = sand.u32 %s33, 1
          %s1146 = scalar_lea.sflag [#allocation12], %s1145
          %s1147 = sand.u32 %s219, 1
          %s1148 = smul.addr %s1147, 8
          %s1149 = scalar_lea.vmem [#allocation11], %s1148
          %1150 = dma.done %s1146, 128
        $region88: #{tpu_custom_call.1} parent=79 // pred_fallthru
          _
        // Predicated region
        $region89: #{tpu_custom_call.1} parent=79 // pred_check
          %p1151 = pneg %p260
        $region90: #{tpu_custom_call.1} parent=79 // pred_check_branch
          %1153 = sbr.rel (%p1151) target = $region92
        $region91: #{tpu_custom_call.1} parent=79 // pred_region
          %s1154 = sand.u32 %s33, 1
          %s1155 = scalar_lea.sflag [#allocation12], %s1154
          %s1156 = sand.u32 %s245, 1
          %s1157 = smul.addr %s1156, 8
          %s1158 = scalar_lea.vmem [#allocation13], %s1157
          %1159 = dma.done %s1155, 128
        $region92: #{tpu_custom_call.1} parent=79 // pred_fallthru
          _
      $region80: #{tpu_custom_call.1} parent=5 // pred_fallthru
        _
    $region6: #{tpu_custom_call.1} parent=1 // loop_footer
      %s31 = sadd.s32 1, %s27
    $region7: #{tpu_custom_call.1} parent=1 // loop_footer_branch
      %26 = sbr.rel target = $region3
    $region8: #{tpu_custom_call.1} parent=1 // loop_exit
      _
    %1160 = vsyncpa [#allocation3], 1
    %s1161 = scalar_lea.sflag [#allocation3], 1
    %1162 = vsyncpa %s1161, 1
    %1163 = vsyncpa [#allocation6], 1
    %1164 = vsyncpa [#allocation9], 1
    %1165 = vsyncpa [#allocation4], 1
    %s1166 = scalar_lea.sflag [#allocation4], 1
    %1167 = vsyncpa %s1166, 1
    %1168 = vsyncpa [#allocation12], 1
    %s1169 = scalar_lea.sflag [#allocation12], 1
    %1170 = vsyncpa %s1169, 1

</llo_original>
